<compile_context>
chip_gen: v6e
topology: v6e:2x2x1
jax: 0.10.0
libtpu: 0.0.40
codegen_flags: <defaults>
</compile_context>

<pallas_src>
import functools

import jax
import jax.numpy as jnp
from jax.experimental import pallas as pl
from jax.experimental.pallas import tpu as pltpu


IN_DIM = 4          # nn.Linear(4, 5000)
HIDDEN = 5000       # logical hidden width (matches the torch module)
HIDDEN_PAD = 5120   # padded to a multiple of 128 for lane-dense tiles
HEADS_PAD = 128     # fused policy+value head lanes (requires actions + 1 <= 128)


def _network_fwd_kernel(x_ref, w1_ref, b1_ref, wh_ref, bh_ref, out_ref, acc_ref,
                        *, actions):
    """One (batch-block, hidden-chunk) grid step.

    out[:, :A] = softmax(policy logits), out[:, A] = value, remaining lanes = 0.
    """
    c = pl.program_id(1)

    @pl.when(c == 0)
    def _init():
        acc_ref[...] = jnp.zeros_like(acc_ref)

    # hidden chunk = relu(x @ W_fc + b_fc)[:, chunk]. K = 4, so instead of a
    # zero-padded MXU contraction use 4 VPU broadcast-FMAs over the chunk.
    x = x_ref[...]                          # [bm, IN_DIM]
    w1 = w1_ref[...]                        # [IN_DIM, chunk]
    h = b1_ref[...]                         # [1, chunk], broadcasts over batch
    for k in range(IN_DIM):
        h = h + x[:, k:k + 1] * w1[k:k + 1, :]
    h = jnp.maximum(h, 0.0)                 # [bm, chunk]

    # Fused policy+value heads, canonical [K, N] MXU feed; f32 accumulation.
    acc_ref[...] += jnp.dot(h.astype(wh_ref.dtype), wh_ref[...],
                            preferred_element_type=jnp.float32)

    @pl.when(c == pl.num_programs(1) - 1)
    def _finalize():
        heads = acc_ref[...] + bh_ref[...]  # [bm, HEADS_PAD]
        # Numerically-stable softmax over the first `actions` lanes only.
        col = jax.lax.broadcasted_iota(jnp.int32, heads.shape, dimension=1)
        is_policy = col < actions
        logits = jnp.where(is_policy, heads, -jnp.inf)
        m = jnp.max(logits, axis=-1, keepdims=True)
        e = jnp.exp(logits - m)             # exactly 0 on non-policy lanes
        denom = jnp.sum(e, axis=-1, keepdims=True)
        probs = e * pl.reciprocal(denom, approx=False)
        # probs in lanes [0, A), value in lane A, zeros afterwards.
        out_ref[...] = jnp.where(is_policy, probs, heads)


def init_params(key, in_dim=IN_DIM, hidden=HIDDEN, actions=2):
    """Logical (un-padded) params mimicking torch.nn.Linear default init
    (U[-1/sqrt(fan_in), 1/sqrt(fan_in)]). Weights stored [in, out]."""
    ks = jax.random.split(key, 6)

    def uni(k, shape, fan_in):
        bound = 1.0 / jnp.sqrt(jnp.float32(fan_in))
        return jax.random.uniform(k, shape, jnp.float32, -bound, bound)

    w1 = uni(ks[0], (in_dim, hidden), in_dim)
    b1 = uni(ks[1], (1, hidden), in_dim)
    w2 = uni(ks[2], (hidden, actions), hidden)
    b2 = uni(ks[3], (1, actions), hidden)
    w3 = uni(ks[4], (hidden, 1), hidden)
    b3 = uni(ks[5], (1, 1), hidden)
    return (w1, b1, w2, b2, w3, b3)


def pack_params(params, head_weight_dtype=jnp.float32):
    """Pad HIDDEN -> HIDDEN_PAD with zeros and fuse the two heads into a single
    canonical [K, N] = [HIDDEN_PAD, HEADS_PAD] weight + [1, HEADS_PAD] bias.
    `head_weight_dtype=jnp.bfloat16` halves the dominant weight DMA (lossy)."""
    w1, b1, w2, b2, w3, b3 = params
    actions = w2.shape[1]
    assert actions + 1 <= HEADS_PAD

    w1p = jnp.zeros((IN_DIM, HIDDEN_PAD), jnp.float32).at[:, :HIDDEN].set(w1)
    b1p = jnp.zeros((1, HIDDEN_PAD), jnp.float32).at[:, :HIDDEN].set(b1)

    wh = jnp.zeros((HIDDEN_PAD, HEADS_PAD), jnp.float32)
    wh = wh.at[:HIDDEN, :actions].set(w2)          # policy columns
    wh = wh.at[:HIDDEN, actions].set(w3[:, 0])     # value column
    wh = wh.astype(head_weight_dtype)

    bh = jnp.zeros((1, HEADS_PAD), jnp.float32)
    bh = bh.at[:, :actions].set(b2)
    bh = bh.at[:, actions].set(b3[0, 0])
    return (w1p, b1p, wh, bh), actions


def _round_up(x, m):
    return (x + m - 1) // m * m


def network_forward(x, packed_params, actions, *, batch_block=None,
                    hidden_chunk=1024):
    """x: [B, 4] float32. Returns (policy_probs [B, A], v [B, 1])."""
    w1p, b1p, wh, bh = packed_params
    assert HIDDEN_PAD % hidden_chunk == 0 and hidden_chunk % 128 == 0
    B = x.shape[0]

    if batch_block is None:
        # Keep >= 2 batch blocks for moderate batches (both v7x TCs get work);
        # only fill the full 256-high MXU when there is plenty of parallelism.
        batch_block = 256 if B >= 1024 else 128
    bm = min(batch_block, _round_up(B, 8))         # sublane-aligned batch block
    padded_b = _round_up(B, bm)                    # cdiv gridding via zero-pad
    if padded_b != B:
        x = jnp.pad(x, ((0, padded_b - B), (0, 0)))

    grid = (padded_b // bm, HIDDEN_PAD // hidden_chunk)
    kernel = functools.partial(_network_fwd_kernel, actions=actions)

    out = pl.pallas_call(
        kernel,
        out_shape=jax.ShapeDtypeStruct((padded_b, HEADS_PAD), jnp.float32),
        grid=grid,
        in_specs=[
            pl.BlockSpec((bm, IN_DIM), lambda i, c: (i, 0)),
            pl.BlockSpec((IN_DIM, hidden_chunk), lambda i, c: (0, c)),
            pl.BlockSpec((1, hidden_chunk), lambda i, c: (0, c)),
            pl.BlockSpec((hidden_chunk, HEADS_PAD), lambda i, c: (c, 0)),
            pl.BlockSpec((1, HEADS_PAD), lambda i, c: (0, 0)),
        ],
        out_specs=pl.BlockSpec((bm, HEADS_PAD), lambda i, c: (i, 0)),
        scratch_shapes=[pltpu.VMEM((bm, HEADS_PAD), jnp.float32)],
        compiler_params=pltpu.CompilerParams(
            dimension_semantics=("parallel", "arbitrary"),
            vmem_limit_bytes=16 << 20,
        ),
    )(x, w1p, b1p, wh, bh)

    probs = out[:B, :actions]
    v = out[:B, actions:actions + 1]
    return probs, v


def _reference_forward(x, params):
    w1, b1, w2, b2, w3, b3 = params
    hp = jax.lax.Precision.HIGHEST
    h = jnp.maximum(jnp.dot(x, w1, precision=hp) + b1, 0.0)
    probs = jax.nn.softmax(jnp.dot(h, w2, precision=hp) + b2, axis=-1)
    v = jnp.dot(h, w3, precision=hp) + b3
    return probs, v


if __name__ == "__main__":
    key = jax.random.PRNGKey(0)
    pkey, xkey, xkey2 = jax.random.split(key, 3)

    A = 2  # e.g. CartPole's 2 discrete actions
    params = init_params(pkey, actions=A)
    packed, actions = pack_params(params)

    # --- small batch (typical single-env REINFORCE step): 1 batch block ------
    B = 8
    x = jax.random.normal(xkey, (B, IN_DIM), jnp.float32)
    probs, v = network_forward(x, packed, actions)
    jax.block_until_ready((probs, v))

    ref_probs, ref_v = _reference_forward(x, params)
    assert probs.shape == (B, A) and v.shape == (B, 1)
    assert jnp.allclose(probs, ref_probs, atol=2e-5, rtol=2e-5)
    assert jnp.allclose(v, ref_v, atol=2e-4, rtol=2e-4)
    assert jnp.allclose(jnp.sum(probs, axis=-1), 1.0, atol=1e-5)

    # --- rollout batch NOT divisible by the batch block: cdiv grid + padding -
    B2 = 200
    x2 = jax.random.normal(xkey2, (B2, IN_DIM), jnp.float32)
    probs2, v2 = network_forward(x2, packed, actions)
    jax.block_until_ready((probs2, v2))

    ref_probs2, ref_v2 = _reference_forward(x2, params)
    assert probs2.shape == (B2, A) and v2.shape == (B2, 1)
    assert jnp.allclose(probs2, ref_probs2, atol=2e-5, rtol=2e-5)
    assert jnp.allclose(v2, ref_v2, atol=2e-4, rtol=2e-4)

    # --- optional bf16 head weights (v5e DMA-bound path); loose tolerance ----
    packed_bf16, _ = pack_params(params, head_weight_dtype=jnp.bfloat16)
    probs3, v3 = network_forward(x, packed_bf16, actions)
    jax.block_until_ready((probs3, v3))
    assert jnp.allclose(probs3, ref_probs, atol=5e-2)
    assert jnp.allclose(v3, ref_v, atol=5e-2)

    print("KERNEL_OK")
</pallas_src>

<mosaic_0001>
module attributes {stable_mosaic.version = 11 : i64} {
  func.func @_network_fwd_kernel(%arg0: i32, %arg1: i32, %arg2: memref<8x4xf32, #tpu.memory_space<vmem>>, %arg3: memref<4x1024xf32, #tpu.memory_space<vmem>>, %arg4: memref<1x1024xf32, #tpu.memory_space<vmem>>, %arg5: memref<1024x128xf32, #tpu.memory_space<vmem>>, %arg6: memref<1x128xf32, #tpu.memory_space<vmem>>, %arg7: memref<8x128xf32, #tpu.memory_space<vmem>>, %arg8: memref<8x128xf32, #tpu.memory_space<vmem>>) attributes {dimension_semantics = [#tpu.dimension_semantics<parallel>, #tpu.dimension_semantics<arbitrary>], iteration_bounds = array<i64: 1, 5>, scalar_prefetch = 0 : i64, scratch_operands = 1 : i64, tpu.core_type = #tpu.core_type<tc>, window_params = [{transform_indices = @transform_0, window_bounds = array<i64: 8, 4>}, {transform_indices = @transform_1, window_bounds = array<i64: 4, 1024>}, {transform_indices = @transform_2, window_bounds = array<i64: 1, 1024>}, {transform_indices = @transform_3, window_bounds = array<i64: 1024, 128>}, {pipeline_mode = #tpu.pipeline_mode<synchronous>, transform_indices = @transform_4, window_bounds = array<i64: 1, 128>}, {transform_indices = @transform_5, window_bounds = array<i64: 8, 128>}]} {
    %c0_i32 = arith.constant 0 : i32
    %0 = arith.cmpi eq, %arg1, %c0_i32 : i32
    %1 = arith.extui %0 : i1 to i32
    %c0_i32_0 = arith.constant 0 : i32
    %2 = arith.cmpi ne, %1, %c0_i32_0 : i32
    scf.if %2 {
      %cst_14 = arith.constant 0.000000e+00 : f32
      %41 = vector.broadcast %cst_14 : f32 to vector<8x128xf32>
      %c0_15 = arith.constant 0 : index
      %c0_16 = arith.constant 0 : index
      %42 = vector.load %arg8[%c0_15, %c0_16] : memref<8x128xf32, #tpu.memory_space<vmem>>, vector<8x128xf32>
      tpu.vector_store %arg8[%c0_15, %c0_16], %41 {strides = array<i32>} : memref<8x128xf32, #tpu.memory_space<vmem>>, vector<8x128xf32>,
    } else {
    }
    %c0 = arith.constant 0 : index
    %c0_1 = arith.constant 0 : index
    %3 = vector.load %arg2[%c0, %c0_1] : memref<8x4xf32, #tpu.memory_space<vmem>>, vector<8x4xf32>
    %c0_2 = arith.constant 0 : index
    %c0_3 = arith.constant 0 : index
    %4 = vector.load %arg3[%c0_2, %c0_3] : memref<4x1024xf32, #tpu.memory_space<vmem>>, vector<4x1024xf32>
    %c0_4 = arith.constant 0 : index
    %c0_5 = arith.constant 0 : index
    %5 = vector.load %arg4[%c0_4, %c0_5] : memref<1x1024xf32, #tpu.memory_space<vmem>>, vector<1x1024xf32>
    %6 = vector.extract_strided_slice %3 {offsets = [0, 0], sizes = [8, 1], strides = [1, 1]} : vector<8x4xf32> to vector<8x1xf32>
    %7 = vector.extract_strided_slice %4 {offsets = [0, 0], sizes = [1, 1024], strides = [1, 1]} : vector<4x1024xf32> to vector<1x1024xf32>
    %8 = vector.broadcast %6 : vector<8x1xf32> to vector<8x1024xf32>
    %9 = vector.broadcast %7 : vector<1x1024xf32> to vector<8x1024xf32>
    %10 = arith.mulf %8, %9 : vector<8x1024xf32>
    %11 = vector.broadcast %5 : vector<1x1024xf32> to vector<8x1024xf32>
    %12 = arith.addf %11, %10 : vector<8x1024xf32>
    %13 = vector.extract_strided_slice %3 {offsets = [0, 1], sizes = [8, 1], strides = [1, 1]} : vector<8x4xf32> to vector<8x1xf32>
    %14 = vector.extract_strided_slice %4 {offsets = [1, 0], sizes = [1, 1024], strides = [1, 1]} : vector<4x1024xf32> to vector<1x1024xf32>
    %15 = vector.broadcast %13 : vector<8x1xf32> to vector<8x1024xf32>
    %16 = vector.broadcast %14 : vector<1x1024xf32> to vector<8x1024xf32>
    %17 = arith.mulf %15, %16 : vector<8x1024xf32>
    %18 = arith.addf %12, %17 : vector<8x1024xf32>
    %19 = vector.extract_strided_slice %3 {offsets = [0, 2], sizes = [8, 1], strides = [1, 1]} : vector<8x4xf32> to vector<8x1xf32>
    %20 = vector.extract_strided_slice %4 {offsets = [2, 0], sizes = [1, 1024], strides = [1, 1]} : vector<4x1024xf32> to vector<1x1024xf32>
    %21 = vector.broadcast %19 : vector<8x1xf32> to vector<8x1024xf32>
    %22 = vector.broadcast %20 : vector<1x1024xf32> to vector<8x1024xf32>
    %23 = arith.mulf %21, %22 : vector<8x1024xf32>
    %24 = arith.addf %18, %23 : vector<8x1024xf32>
    %25 = vector.extract_strided_slice %3 {offsets = [0, 3], sizes = [8, 1], strides = [1, 1]} : vector<8x4xf32> to vector<8x1xf32>
    %26 = vector.extract_strided_slice %4 {offsets = [3, 0], sizes = [1, 1024], strides = [1, 1]} : vector<4x1024xf32> to vector<1x1024xf32>
    %27 = vector.broadcast %25 : vector<8x1xf32> to vector<8x1024xf32>
    %28 = vector.broadcast %26 : vector<1x1024xf32> to vector<8x1024xf32>
    %29 = arith.mulf %27, %28 : vector<8x1024xf32>
    %30 = arith.addf %24, %29 : vector<8x1024xf32>
    %cst = arith.constant 0.000000e+00 : f32
    %31 = vector.broadcast %cst : f32 to vector<8x1024xf32>
    %32 = arith.maximumf %30, %31 : vector<8x1024xf32>
    %c0_6 = arith.constant 0 : index
    %c0_7 = arith.constant 0 : index
    %33 = vector.load %arg8[%c0_6, %c0_7] : memref<8x128xf32, #tpu.memory_space<vmem>>, vector<8x128xf32>
    %c0_8 = arith.constant 0 : index
    %c0_9 = arith.constant 0 : index
    %34 = vector.load %arg5[%c0_8, %c0_9] : memref<1024x128xf32, #tpu.memory_space<vmem>>, vector<1024x128xf32>
    %cst_10 = arith.constant dense<0.000000e+00> : vector<8x128xf32>
    %35 = tpu.matmul %32, %34, %cst_10 {dimension_numbers = #tpu.dot_dimension_numbers<[1], [0], [0], [1], [0, 0, 1, 1], [], []>} : vector<8x1024xf32>, vector<1024x128xf32>, vector<8x128xf32> -> vector<8x128xf32>
    %36 = arith.addf %33, %35 : vector<8x128xf32>
    %c0_11 = arith.constant 0 : index
    %c0_12 = arith.constant 0 : index
    %37 = vector.load %arg8[%c0_11, %c0_12] : memref<8x128xf32, #tpu.memory_space<vmem>>, vector<8x128xf32>
    tpu.vector_store %arg8[%c0_11, %c0_12], %36 {strides = array<i32>} : memref<8x128xf32, #tpu.memory_space<vmem>>, vector<8x128xf32>,
    %c4_i32 = arith.constant 4 : i32
    %38 = arith.cmpi eq, %arg1, %c4_i32 : i32
    %39 = arith.extui %38 : i1 to i32
    %c0_i32_13 = arith.constant 0 : i32
    %40 = arith.cmpi ne, %39, %c0_i32_13 : i32
    scf.if %40 {
      %c0_14 = arith.constant 0 : index
      %c0_15 = arith.constant 0 : index
      %41 = vector.load %arg8[%c0_14, %c0_15] : memref<8x128xf32, #tpu.memory_space<vmem>>, vector<8x128xf32>
      %c0_16 = arith.constant 0 : index
      %c0_17 = arith.constant 0 : index
      %42 = vector.load %arg6[%c0_16, %c0_17] : memref<1x128xf32, #tpu.memory_space<vmem>>, vector<1x128xf32>
      %43 = vector.broadcast %42 : vector<1x128xf32> to vector<8x128xf32>
      %44 = arith.addf %41, %43 : vector<8x128xf32>
      %45 = tpu.iota {dimensions = array<i32: 1>} : vector<8x128xi32>
      %c2_i32 = arith.constant 2 : i32
      %46 = vector.broadcast %c2_i32 : i32 to vector<8x128xi32>
      %47 = arith.cmpi slt, %45, %46 : vector<8x128xi32>
      %cst_18 = arith.constant 0xFF800000 : f32
      %48 = vector.broadcast %cst_18 : f32 to vector<8x128xf32>
      %49 = arith.select %47, %44, %48 : vector<8x128xi1>, vector<8x128xf32>
      %cst_19 = arith.constant dense<0xFF800000> : vector<8xf32>
      %50 = vector.multi_reduction <maximumf>, %49, %cst_19 [1] : vector<8x128xf32> to vector<8xf32>
      %51 = vector.shape_cast %50 : vector<8xf32> to vector<8x1xf32>
      %52 = vector.broadcast %51 : vector<8x1xf32> to vector<8x128xf32>
      %53 = arith.subf %49, %52 : vector<8x128xf32>
      %54 = math.exp %53 : vector<8x128xf32>
      %cst_20 = arith.constant dense<0.000000e+00> : vector<8xf32>
      %55 = vector.multi_reduction <add>, %54, %cst_20 [1] : vector<8x128xf32> to vector<8xf32>
      %56 = vector.shape_cast %55 : vector<8xf32> to vector<8x1xf32>
      %57 = tpu.reciprocal %56 : vector<8x1xf32> -> vector<8x1xf32>
      %58 = vector.broadcast %57 : vector<8x1xf32> to vector<8x128xf32>
      %59 = arith.mulf %54, %58 : vector<8x128xf32>
      %60 = arith.select %47, %59, %44 : vector<8x128xi1>, vector<8x128xf32>
      %c0_21 = arith.constant 0 : index
      %c0_22 = arith.constant 0 : index
      %61 = vector.load %arg7[%c0_21, %c0_22] : memref<8x128xf32, #tpu.memory_space<vmem>>, vector<8x128xf32>
      tpu.vector_store %arg7[%c0_21, %c0_22], %60 {strides = array<i32>} : memref<8x128xf32, #tpu.memory_space<vmem>>, vector<8x128xf32>,
    } else {
    }
    return
  }
  func.func @transform_0(%arg0: i32, %arg1: i32) -> (i32, i32) {
    %c0_i32 = arith.constant 0 : i32
    %c0_i32_0 = arith.constant 0 : i32
    return %arg0, %c0_i32 : i32, i32
  }
  func.func @transform_1(%arg0: i32, %arg1: i32) -> (i32, i32) {
    %c0_i32 = arith.constant 0 : i32
    %c0_i32_0 = arith.constant 0 : i32
    return %c0_i32, %arg1 : i32, i32
  }
  func.func @transform_2(%arg0: i32, %arg1: i32) -> (i32, i32) {
    %c0_i32 = arith.constant 0 : i32
    %c0_i32_0 = arith.constant 0 : i32
    return %c0_i32, %arg1 : i32, i32
  }
  func.func @transform_3(%arg0: i32, %arg1: i32) -> (i32, i32) {
    %c0_i32 = arith.constant 0 : i32
    %c0_i32_0 = arith.constant 0 : i32
    return %arg1, %c0_i32 : i32, i32
  }
  func.func @transform_4(%arg0: i32, %arg1: i32) -> (i32, i32) {
    %c0_i32 = arith.constant 0 : i32
    %c0_i32_0 = arith.constant 0 : i32
    %c0_i32_1 = arith.constant 0 : i32
    return %c0_i32, %c0_i32_0 : i32, i32
  }
  func.func @transform_5(%arg0: i32, %arg1: i32) -> (i32, i32) {
    %c0_i32 = arith.constant 0 : i32
    %c0_i32_0 = arith.constant 0 : i32
    return %arg0, %c0_i32 : i32, i32
  }
}

</mosaic_0001>

<llo_original>
// kernel: tpu_custom_call.1
$region0: #{tpu_custom_call.1}
  #allocation0 [shape = 'u32[]', space=smem, size = 0x4, offset = 0x4, fixed_abs, tag = 'smem constant byte address 0x4 - core index']
  #allocation1 [shape = 'u32[144,128]{1,0:T(1,128)}', space=vmem, size = 0x12000, scoped, tag = 'internal scratch']
  #allocation2 [shape = 'f32[8,128]{1,0:T(8,128)}', space=vmem, size = 0x1000, scoped, tag = 'scratch operand']
  %s0 = inlined_call_operand.vmem [shape: f32[8,4], index: 0, kind: input, shape index: {}]
  %s1 = inlined_call_operand.hbm [shape: f32[4,5120], index: 1, kind: input, shape index: {}]
  %s2 = inlined_call_operand.hbm [shape: f32[1,5120], index: 2, kind: input, shape index: {}]
  %s3 = inlined_call_operand.hbm [shape: f32[5120,128], index: 3, kind: input, shape index: {}]
  %s4 = inlined_call_operand.hbm [shape: f32[1,128], index: 4, kind: input, shape index: {}]
  %s5 = inlined_call_operand.hbm [shape: f32[8,128], index: 5, kind: output, shape index: {}]
  %s6 = sld [smem:[#allocation0]]
  $region77: #{tpu_custom_call.1} parent=0
    _
  %s8 = ssub.s32 1, %s6
  %s9 = scalar_select 0, %s8, %s6
  $region1: #{tpu_custom_call.1} parent=0
    #allocation3 [shape = 'u8[32768]{0}', space=vmem, size = 0x8000, scoped, tag = 'input window, operand 1']
    #allocation4 [shape = 's32[2]{0}', space=sflag, size = 0x8, scoped, tag = 'scoped memory for tpu_custom_call.1']
    #allocation5 [shape = 's32[2]{0}', space=sflag, size = 0x8, scoped, tag = 'scoped memory for tpu_custom_call.1']
    #allocation6 [shape = 'u8[8192]{0}', space=vmem, size = 0x2000, scoped, tag = 'input window, operand 2']
    #allocation7 [shape = 's32[2]{0}', space=sflag, size = 0x8, scoped, tag = 'scoped memory for tpu_custom_call.1']
    #allocation8 [shape = 'u8[1048576]{0}', space=vmem, size = 0x100000, scoped, tag = 'input window, operand 3']
    #allocation9 [shape = 'u8[512]{0}', space=vmem, size = 0x400, scoped, tag = 'input window, operand 4, single buffered']
    #allocation10 [shape = 's32[1]{0}', space=sflag, size = 0x4, scoped, tag = 'scoped memory for tpu_custom_call.1']
    #allocation11 [shape = 'u8[4096]{0}', space=vmem, size = 0x1000, scoped, tag = 'output window, operand 0, single buffered']
    %10 = vsyncpa [#allocation4], 0
    %s11 = scalar_lea.sflag [#allocation4], 1
    %12 = vsyncpa %s11, 0
    %13 = vsyncpa [#allocation7], 0
    %s14 = scalar_lea.sflag [#allocation7], 1
    %15 = vsyncpa %s14, 0
    %16 = vsyncpa [#allocation10], 0
    %17 = vsyncpa [#allocation5], 0
    loop: start=0, step=1, limit=7
    $region2: #{tpu_custom_call.1} parent=1 // loop_pre_header
      _
    $region3: #{tpu_custom_call.1} parent=1 // loop_header
      %s19 = sphi 0, %s23
      %p20 = scmp.ge.s32.totalorder %s19, 7
      %s26 = sphi 0, %s38
      %s27 = sphi 0, %s34
      %s28 = sphi 0, %s26
      %s29 = sphi 0, %s27
      %s30 = sphi 0, %s28
      %s31 = sphi 0, %s29
      %s41 = sphi 0, %s43
      %s44 = sphi 0, %s41
      %s45 = sphi 0, %s44
      %s61 = sphi 0, %s45
      %s67 = sphi 0, %s69
      %s70 = sphi 0, %s67
      %s71 = sphi 0, %s70
      %s87 = sphi 0, %s71
      %s93 = sphi 0, %s95
      %s96 = sphi 0, %s93
      %s97 = sphi 0, %s96
      %s113 = sphi 0, %s97
      %s119 = sphi 0, %s121
      %s122 = sphi 0, %s119
      %s123 = sphi 0, %s122
      %s139 = sphi 0, %s123
      %s143 = sphi 0, %s143
      %s145 = sphi 0, %s143
      %s146 = sphi 0, %s145
      %s160 = sphi 0, %s146
      %s166 = sphi 0, %s168
      %s169 = sphi 0, %s166
      %s170 = sphi 0, %s169
      %s186 = sphi 0, %s170
    $region4: #{tpu_custom_call.1} parent=1 // loop_header_branch
      %22 = sbr.rel (%p20) target = $region8
    $region5: #{tpu_custom_call.1} parent=1 // loop_body
      %s24 = ssub.s32 %s19, 1
      %s25 = ssub.s32 %s19, 2
      %s32 = sadd.s32 1, %s27
      %p33 = scmp.ge.s32.totalorder %s32, 5
      %s34 = scalar_select %p33, 0, %s32
      %s35 = sadd.s32 1, %s26
      %s36 = scalar_select %p33, %s35, %s26
      %p37 = scmp.ge.s32.totalorder %s36, 1
      %s38 = scalar_select %p37, 0, %s36
      %s39 = ssub.s32 %s26, %s38
      %p40 = scmp.eq.s32.totalorder %s39, 0
      %s42 = sadd.s32 %s41, 1
      %s43 = scalar_select %p40, %s41, %s42
      %p46 = pneg %p40
      %p47 = scmp.eq.s32.totalorder %s19, 4
      %p48 = por %p46, %p47
      %p49 = scmp.ne.s32.totalorder %s41, %s44
      %p50 = scmp.eq.s32.totalorder %s19, 0
      %p51 = por %p49, %p50
      %p52 = scmp.ne.s32.totalorder %s41, %s44
      %p53 = scmp.eq.s32.totalorder %s24, 4
      %p54 = por %p52, %p53
      %p55 = scmp.ne.s32.totalorder %s44, %s45
      %p56 = scmp.eq.s32.totalorder %s24, 0
      %p57 = por %p55, %p56
      %p58 = scmp.ne.s32.totalorder %s44, %s45
      %p59 = scmp.eq.s32.totalorder %s25, 4
      %p60 = por %p58, %p59
      %p62 = scmp.ne.s32.totalorder %s45, %s61
      %p63 = scmp.eq.s32.totalorder %s25, 0
      %p64 = por %p62, %p63
      %s65 = ssub.s32 %s27, %s34
      %p66 = scmp.eq.s32.totalorder %s65, 0
      %s68 = sadd.s32 %s67, 1
      %s69 = scalar_select %p66, %s67, %s68
      %p72 = pneg %p66
      %p73 = scmp.eq.s32.totalorder %s19, 4
      %p74 = por %p72, %p73
      %p75 = scmp.ne.s32.totalorder %s67, %s70
      %p76 = scmp.eq.s32.totalorder %s19, 0
      %p77 = por %p75, %p76
      %p78 = scmp.ne.s32.totalorder %s67, %s70
      %p79 = scmp.eq.s32.totalorder %s24, 4
      %p80 = por %p78, %p79
      %p81 = scmp.ne.s32.totalorder %s70, %s71
      %p82 = scmp.eq.s32.totalorder %s24, 0
      %p83 = por %p81, %p82
      %p84 = scmp.ne.s32.totalorder %s70, %s71
      %p85 = scmp.eq.s32.totalorder %s25, 4
      %p86 = por %p84, %p85
      %p88 = scmp.ne.s32.totalorder %s71, %s87
      %p89 = scmp.eq.s32.totalorder %s25, 0
      %p90 = por %p88, %p89
      %s91 = ssub.s32 %s27, %s34
      %p92 = scmp.eq.s32.totalorder %s91, 0
      %s94 = sadd.s32 %s93, 1
      %s95 = scalar_select %p92, %s93, %s94
      %p98 = pneg %p92
      %p99 = scmp.eq.s32.totalorder %s19, 4
      %p100 = por %p98, %p99
      %p101 = scmp.ne.s32.totalorder %s93, %s96
      %p102 = scmp.eq.s32.totalorder %s19, 0
      %p103 = por %p101, %p102
      %p104 = scmp.ne.s32.totalorder %s93, %s96
      %p105 = scmp.eq.s32.totalorder %s24, 4
      %p106 = por %p104, %p105
      %p107 = scmp.ne.s32.totalorder %s96, %s97
      %p108 = scmp.eq.s32.totalorder %s24, 0
      %p109 = por %p107, %p108
      %p110 = scmp.ne.s32.totalorder %s96, %s97
      %p111 = scmp.eq.s32.totalorder %s25, 4
      %p112 = por %p110, %p111
      %p114 = scmp.ne.s32.totalorder %s97, %s113
      %p115 = scmp.eq.s32.totalorder %s25, 0
      %p116 = por %p114, %p115
      %s117 = ssub.s32 %s27, %s34
      %p118 = scmp.eq.s32.totalorder %s117, 0
      %s120 = sadd.s32 %s119, 1
      %s121 = scalar_select %p118, %s119, %s120
      %p124 = pneg %p118
      %p125 = scmp.eq.s32.totalorder %s19, 4
      %p126 = por %p124, %p125
      %p127 = scmp.ne.s32.totalorder %s119, %s122
      %p128 = scmp.eq.s32.totalorder %s19, 0
      %p129 = por %p127, %p128
      %p130 = scmp.ne.s32.totalorder %s119, %s122
      %p131 = scmp.eq.s32.totalorder %s24, 4
      %p132 = por %p130, %p131
      %p133 = scmp.ne.s32.totalorder %s122, %s123
      %p134 = scmp.eq.s32.totalorder %s24, 0
      %p135 = por %p133, %p134
      %p136 = scmp.ne.s32.totalorder %s122, %s123
      %p137 = scmp.eq.s32.totalorder %s25, 4
      %p138 = por %p136, %p137
      %p140 = scmp.ne.s32.totalorder %s123, %s139
      %p141 = scmp.eq.s32.totalorder %s25, 0
      %p142 = por %p140, %p141
      %s144 = sadd.s32 %s143, 1
      %p147 = scmp.eq.s32.totalorder %s19, 4
      %p148 = scmp.ne.s32.totalorder %s143, %s145
      %p149 = scmp.eq.s32.totalorder %s19, 0
      %p150 = por %p148, %p149
      %p151 = scmp.ne.s32.totalorder %s143, %s145
      %p152 = scmp.eq.s32.totalorder %s24, 4
      %p153 = por %p151, %p152
      %p154 = scmp.ne.s32.totalorder %s145, %s146
      %p155 = scmp.eq.s32.totalorder %s24, 0
      %p156 = por %p154, %p155
      %p157 = scmp.ne.s32.totalorder %s145, %s146
      %p158 = scmp.eq.s32.totalorder %s25, 4
      %p159 = por %p157, %p158
      %p161 = scmp.ne.s32.totalorder %s146, %s160
      %p162 = scmp.eq.s32.totalorder %s25, 0
      %p163 = por %p161, %p162
      %s164 = ssub.s32 %s26, %s38
      %p165 = scmp.eq.s32.totalorder %s164, 0
      %s167 = sadd.s32 %s166, 1
      %s168 = scalar_select %p165, %s166, %s167
      %p171 = pneg %p165
      %p172 = scmp.eq.s32.totalorder %s19, 4
      %p173 = por %p171, %p172
      %p174 = scmp.ne.s32.totalorder %s166, %s169
      %p175 = scmp.eq.s32.totalorder %s19, 0
      %p176 = por %p174, %p175
      %p177 = scmp.ne.s32.totalorder %s166, %s169
      %p178 = scmp.eq.s32.totalorder %s24, 4
      %p179 = por %p177, %p178
      %p180 = scmp.ne.s32.totalorder %s169, %s170
      %p181 = scmp.eq.s32.totalorder %s24, 0
      %p182 = por %p180, %p181
      %p183 = scmp.ne.s32.totalorder %s169, %s170
      %p184 = scmp.eq.s32.totalorder %s25, 4
      %p185 = por %p183, %p184
      %p187 = scmp.ne.s32.totalorder %s170, %s186
      %p188 = scmp.eq.s32.totalorder %s25, 0
      %p189 = por %p187, %p188
      %p190 = scmp.le.s32.totalorder 1, %s19
      %p191 = scmp.lt.s32.totalorder %s19, 6
      %p192 = pnand %p190, %p191
      %p193 = pneg %p192
      // Predicated region
      $region9: #{tpu_custom_call.1} parent=5 // pred_check
        _
      $region10: #{tpu_custom_call.1} parent=5 // pred_check_branch
        %195 = sbr.rel (%p192) target = $region12
      $region11: #{tpu_custom_call.1} parent=5 // pred_region
        %s196 = ssub.s32 %s19, 1
        // Predicated region
        $region13: #{tpu_custom_call.1} parent=11 // pred_check
          %p197 = pneg %p57
        $region14: #{tpu_custom_call.1} parent=11 // pred_check_branch
          %199 = sbr.rel (%p197) target = $region16
        $region15: #{tpu_custom_call.1} parent=11 // pred_region
          %p200 = scmp.lt.s32.totalorder %s28, 0
          %s201 = scalar_select %p200, %s28, 0
          %s202 = smul.addr %s201, 8
          %s203 = scalar_lea.vmem %s0, %s202
        $region16: #{tpu_custom_call.1} parent=11 // pred_fallthru
          _
        // Predicated region
        $region17: #{tpu_custom_call.1} parent=11 // pred_check
          %p204 = pneg %p156
        $region18: #{tpu_custom_call.1} parent=11 // pred_check_branch
          %206 = sbr.rel (%p204) target = $region20
        $region19: #{tpu_custom_call.1} parent=11 // pred_region
          %s208 = ssub.s32 16, 16
          %209 = vsyncadd [#allocation10], %s208
          %s211 = sshll.u32 [#allocation9], 4
          %s212 = int_to_ptr.vmem [resolvable:$true] %s211
          %214 = dma.hbm_to_vmem [thread:$0]  %s4, 16, %s212, [#allocation10]
        $region20: #{tpu_custom_call.1} parent=11 // pred_fallthru
          _
      $region12: #{tpu_custom_call.1} parent=5 // pred_fallthru
        _
      %p215 = scmp.lt.s32.totalorder %s19, 5
      // Predicated region
      $region21: #{tpu_custom_call.1} parent=5 // pred_check
        %p216 = pneg %p215
      $region22: #{tpu_custom_call.1} parent=5 // pred_check_branch
        %218 = sbr.rel (%p216) target = $region24
      $region23: #{tpu_custom_call.1} parent=5 // pred_region
        // Predicated region
        $region25: #{tpu_custom_call.1} parent=23 // pred_check
          %p219 = pneg %p77
        $region26: #{tpu_custom_call.1} parent=23 // pred_check_branch
          %221 = sbr.rel (%p219) target = $region28
        $region27: #{tpu_custom_call.1} parent=23 // pred_region
          %s222 = sand.u32 %s67, 1
          %s223 = scalar_lea.sflag [#allocation4], %s222
          %s224 = sand.u32 %s67, 1
          %s225 = smul.addr %s224, 32
          %s226 = scalar_lea.vmem [#allocation3], %s225
          %s227 = smul.u32 8, %s27
          %s229 = ssub.s32 512, 512
          %230 = vsyncadd %s223, %s229
          %s231 = smul.addr %s227, 64
          %s232 = scalar_lea.hbm %s1, %s231
          %s234 = sshll.u32 %s226, 4
          %s235 = int_to_ptr.vmem [resolvable:$true] %s234
          %237 = dma.hbm_to_vmem [thread:$0]  %s232, 512, %s235, %s223
        $region28: #{tpu_custom_call.1} parent=23 // pred_fallthru
          _
        // Predicated region
        $region29: #{tpu_custom_call.1} parent=23 // pred_check
          %p238 = pneg %p103
        $region30: #{tpu_custom_call.1} parent=23 // pred_check_branch
          %240 = sbr.rel (%p238) target = $region32
        $region31: #{tpu_custom_call.1} parent=23 // pred_region
          %s241 = sand.u32 %s19, 1
          %s242 = scalar_lea.sflag [#allocation7], %s241
          %s243 = sand.u32 %s93, 1
          %s244 = smul.addr %s243, 8
          %s245 = scalar_lea.vmem [#allocation6], %s244
          %s246 = smul.u32 8, %s27
          %s248 = ssub.s32 128, 128
          %249 = vsyncadd %s242, %s248
          %s250 = smul.addr %s246, 16
          %s251 = scalar_lea.hbm %s2, %s250
          %s253 = sshll.u32 %s245, 4
          %s254 = int_to_ptr.vmem [resolvable:$true] %s253
          %256 = dma.hbm_to_vmem [thread:$0]  %s251, 128, %s254, %s242
        $region32: #{tpu_custom_call.1} parent=23 // pred_fallthru
          _
        // Predicated region
        $region33: #{tpu_custom_call.1} parent=23 // pred_check
          %p257 = pneg %p129
        $region34: #{tpu_custom_call.1} parent=23 // pred_check_branch
          %259 = sbr.rel (%p257) target = $region36
        $region35: #{tpu_custom_call.1} parent=23 // pred_region
          %s260 = sand.u32 %s19, 1
          %s261 = scalar_lea.sflag [#allocation7], %s260
          %s262 = sand.u32 %s119, 1
          %s263 = smul.addr %s262, 1024
          %s264 = scalar_lea.vmem [#allocation8], %s263
          %s265 = smul.u32 128, %s27
          %s267 = ssub.s32 16384, 16384
          %268 = vsyncadd %s261, %s267
          %s269 = smul.addr %s265, 128
          %s270 = scalar_lea.hbm %s3, %s269
          %s271 = sshll.u32 %s264, 4
          %s272 = int_to_ptr.vmem [resolvable:$true] %s271
          %277 = dma.hbm_to_vmem [thread:$0]  %s270, 16384, %s272, %s261, 128, 128, 8
        $region36: #{tpu_custom_call.1} parent=23 // pred_fallthru
          _
      $region24: #{tpu_custom_call.1} parent=5 // pred_fallthru
        _
      %p278 = scmp.le.s32.totalorder 1, %s19
      %p279 = scmp.lt.s32.totalorder %s19, 6
      %p280 = pnand %p278, %p279
      %p281 = pneg %p280
      // Predicated region
      $region37: #{tpu_custom_call.1} parent=5 // pred_check
        _
      $region38: #{tpu_custom_call.1} parent=5 // pred_check_branch
        %283 = sbr.rel (%p280) target = $region40
      $region39: #{tpu_custom_call.1} parent=5 // pred_region
        %s284 = ssub.s32 %s19, 1
        %s285 = sand.u32 %s70, 1
        %s286 = scalar_lea.sflag [#allocation4], %s285
        %s287 = sand.u32 %s70, 1
        %s288 = smul.addr %s287, 32
        %s289 = scalar_lea.vmem [#allocation3], %s288
        // Predicated region
        $region41: #{tpu_custom_call.1} parent=39 // pred_check
          %p290 = pneg %p83
        $region42: #{tpu_custom_call.1} parent=39 // pred_check_branch
          %292 = sbr.rel (%p290) target = $region44
        $region43: #{tpu_custom_call.1} parent=39 // pred_region
          %293 = dma.done %s286, 512
        $region44: #{tpu_custom_call.1} parent=39 // pred_fallthru
          _
        %s294 = sand.u32 %s24, 1
        %s295 = scalar_lea.sflag [#allocation7], %s294
        %s296 = sand.u32 %s96, 1
        %s297 = smul.addr %s296, 8
        %s298 = scalar_lea.vmem [#allocation6], %s297
        // Predicated region
        $region45: #{tpu_custom_call.1} parent=39 // pred_check
          %p299 = pneg %p109
        $region46: #{tpu_custom_call.1} parent=39 // pred_check_branch
          %301 = sbr.rel (%p299) target = $region48
        $region47: #{tpu_custom_call.1} parent=39 // pred_region
          %302 = dma.done %s295, 128
        $region48: #{tpu_custom_call.1} parent=39 // pred_fallthru
          _
        %s303 = sand.u32 %s24, 1
        %s304 = scalar_lea.sflag [#allocation7], %s303
        %s305 = sand.u32 %s122, 1
        %s306 = smul.addr %s305, 1024
        %s307 = scalar_lea.vmem [#allocation8], %s306
        // Predicated region
        $region49: #{tpu_custom_call.1} parent=39 // pred_check
          %p308 = pneg %p135
        $region50: #{tpu_custom_call.1} parent=39 // pred_check_branch
          %310 = sbr.rel (%p308) target = $region52
        $region51: #{tpu_custom_call.1} parent=39 // pred_region
          %311 = dma.done %s304, 16384
        $region52: #{tpu_custom_call.1} parent=39 // pred_fallthru
          _
        // Predicated region
        $region53: #{tpu_custom_call.1} parent=39 // pred_check
          %p312 = pneg %p156
        $region54: #{tpu_custom_call.1} parent=39 // pred_check_branch
          %314 = sbr.rel (%p312) target = $region56
        $region55: #{tpu_custom_call.1} parent=39 // pred_region
          %315 = dma.done [#allocation10], 16
        $region56: #{tpu_custom_call.1} parent=39 // pred_fallthru
          _
        %p316 = scmp.lt.s32.totalorder %s28, 0
        %s317 = scalar_select %p316, %s28, 0
        %s318 = smul.addr %s317, 8
        %s319 = scalar_lea.vmem %s0, %s318
        %p320 = pneg %p57
        %p321 = pneg %p54
        %s322 = sand.u32 %s70, 1
        %s323 = scalar_lea.sflag [#allocation4], %s322
        %s324 = sand.u32 %s70, 1
        %s325 = smul.addr %s324, 32
        %s326 = scalar_lea.vmem [#allocation3], %s325
        %p327 = pneg %p83
        %p328 = pneg %p80
        %s329 = sand.u32 %s24, 1
        %s330 = scalar_lea.sflag [#allocation7], %s329
        %s331 = sand.u32 %s96, 1
        %s332 = smul.addr %s331, 8
        %s333 = scalar_lea.vmem [#allocation6], %s332
        %p334 = pneg %p109
        %p335 = pneg %p106
        %s336 = sand.u32 %s24, 1
        %s337 = scalar_lea.sflag [#allocation7], %s336
        %s338 = sand.u32 %s122, 1
        %s339 = smul.addr %s338, 1024
        %s340 = scalar_lea.vmem [#allocation8], %s339
        %p341 = pneg %p135
        %p342 = pneg %p132
        %p343 = pneg %p156
        %p344 = pneg %p153
        %p345 = pneg %p182
        %p346 = pneg %p179
        %p347 = scmp.lt.s32.totalorder %s28, 0
        %s348 = scalar_select %p347, %s28, 0
        %s349 = smul.addr %s348, 8
        %s350 = scalar_lea.vmem %s0, %s349
        %s351 = smul.u32 8, %s29
        %s352 = smul.u32 8, %s29
        %s353 = smul.u32 128, %s29
        %p354 = scmp.eq.s32.totalorder %s29, 0
        // Predicated region
        $region57: #{tpu_custom_call.1} parent=39 // pred_check
          %p355 = pneg %p354
        $region58: #{tpu_custom_call.1} parent=39 // pred_check_branch
          %357 = sbr.rel (%p355) target = $region60
        $region59: #{tpu_custom_call.1} parent=39 // pred_region
          %358 = vst [vmem:[#allocation2] sm:$0xff] 0.0
        $region60: #{tpu_custom_call.1} parent=39 // pred_fallthru
          _
        %v359 = vld [vmem:[%s350] sm:$0xff]
        %v360 = vld [vmem:[%s289] sm:$0xff]
        %v361 = vld [vmem:[%s289 + $0x8] sm:$0xff]
        %v362 = vld [vmem:[%s289 + $0x10] sm:$0xff]
        %v363 = vld [vmem:[%s289 + $0x18] sm:$0xff]
        %v364 = vld [vmem:[%s298] sm:$0xff]
        %366 = vset.pattern.permute.xlu0 0
        %367 = vperm.xlu0 %366, %v359
        %v368 = vpop.permute.xlu0 %367
        %v374 = vlaneseq
        %v375 = vshrl.u32 %v374, 7
        %v376 = vsub.s32 0, %v375
        %v377 = vrot.slane %v360, %v376
        %v378 = vlaneseq
        %v379 = vshrl.u32 %v378, 7
        %v380 = vsub.s32 4, %v379
        %v381 = vrot.slane %v360, %v380
        %v382 = vlaneseq
        %v383 = vshrl.u32 %v382, 7
        %v384 = vsub.s32 0, %v383
        %v385 = vrot.slane %v361, %v384
        %v386 = vlaneseq
        %v387 = vshrl.u32 %v386, 7
        %v388 = vsub.s32 4, %v387
        %v389 = vrot.slane %v361, %v388
        %v390 = vlaneseq
        %v391 = vshrl.u32 %v390, 7
        %v392 = vsub.s32 0, %v391
        %v393 = vrot.slane %v362, %v392
        %v394 = vlaneseq
        %v395 = vshrl.u32 %v394, 7
        %v396 = vsub.s32 4, %v395
        %v397 = vrot.slane %v362, %v396
        %v398 = vlaneseq
        %v399 = vshrl.u32 %v398, 7
        %v400 = vsub.s32 0, %v399
        %v401 = vrot.slane %v363, %v400
        %v402 = vlaneseq
        %v403 = vshrl.u32 %v402, 7
        %v404 = vsub.s32 4, %v403
        %v405 = vrot.slane %v363, %v404
        %v414 = vlaneseq
        %v415 = vshrl.u32 %v414, 7
        %v416 = vsub.s32 0, %v415
        %v417 = vrot.slane %v377, %v416
        %v418 = vlaneseq
        %v419 = vshrl.u32 %v418, 7
        %v420 = vsub.s32 0, %v419
        %v421 = vrot.slane %v381, %v420
        %v422 = vlaneseq
        %v423 = vshrl.u32 %v422, 7
        %v424 = vsub.s32 0, %v423
        %v425 = vrot.slane %v385, %v424
        %v426 = vlaneseq
        %v427 = vshrl.u32 %v426, 7
        %v428 = vsub.s32 0, %v427
        %v429 = vrot.slane %v389, %v428
        %v430 = vlaneseq
        %v431 = vshrl.u32 %v430, 7
        %v432 = vsub.s32 0, %v431
        %v433 = vrot.slane %v393, %v432
        %v434 = vlaneseq
        %v435 = vshrl.u32 %v434, 7
        %v436 = vsub.s32 0, %v435
        %v437 = vrot.slane %v397, %v436
        %v438 = vlaneseq
        %v439 = vshrl.u32 %v438, 7
        %v440 = vsub.s32 0, %v439
        %v441 = vrot.slane %v401, %v440
        %v442 = vlaneseq
        %v443 = vshrl.u32 %v442, 7
        %v444 = vsub.s32 0, %v443
        %v445 = vrot.slane %v405, %v444
        %v446 = vmul.f32 %v368, %v417
        %v447 = vmul.f32 %v368, %v421
        %v448 = vmul.f32 %v368, %v425
        %v449 = vmul.f32 %v368, %v429
        %v450 = vmul.f32 %v368, %v433
        %v451 = vmul.f32 %v368, %v437
        %v452 = vmul.f32 %v368, %v441
        %v453 = vmul.f32 %v368, %v445
        %v455 = vlaneseq
        %v456 = vshrl.u32 %v455, 7
        %v457 = vsub.s32 0, %v456
        %v458 = vrot.slane %v364, %v457
        %v459 = vlaneseq
        %v460 = vshrl.u32 %v459, 7
        %v461 = vsub.s32 1, %v460
        %v462 = vrot.slane %v364, %v461
        %v463 = vlaneseq
        %v464 = vshrl.u32 %v463, 7
        %v465 = vsub.s32 2, %v464
        %v466 = vrot.slane %v364, %v465
        %v467 = vlaneseq
        %v468 = vshrl.u32 %v467, 7
        %v469 = vsub.s32 3, %v468
        %v470 = vrot.slane %v364, %v469
        %v471 = vlaneseq
        %v472 = vshrl.u32 %v471, 7
        %v473 = vsub.s32 4, %v472
        %v474 = vrot.slane %v364, %v473
        %v475 = vlaneseq
        %v476 = vshrl.u32 %v475, 7
        %v477 = vsub.s32 5, %v476
        %v478 = vrot.slane %v364, %v477
        %v479 = vlaneseq
        %v480 = vshrl.u32 %v479, 7
        %v481 = vsub.s32 6, %v480
        %v482 = vrot.slane %v364, %v481
        %v483 = vlaneseq
        %v484 = vshrl.u32 %v483, 7
        %v485 = vsub.s32 7, %v484
        %v486 = vrot.slane %v364, %v485
        %v495 = vadd.f32 %v458, %v446
        %v496 = vadd.f32 %v462, %v447
        %v497 = vadd.f32 %v466, %v448
        %v498 = vadd.f32 %v470, %v449
        %v499 = vadd.f32 %v474, %v450
        %v500 = vadd.f32 %v478, %v451
        %v501 = vadd.f32 %v482, %v452
        %v502 = vadd.f32 %v486, %v453
        %503 = vset.pattern.permute.xlu0 1
        %504 = vperm.xlu0 %503, %v359
        %v505 = vpop.permute.xlu0 %504
        %v507 = vlaneseq
        %v508 = vshrl.u32 %v507, 7
        %v509 = vsub.s32 1, %v508
        %v510 = vrot.slane %v360, %v509
        %v511 = vlaneseq
        %v512 = vshrl.u32 %v511, 7
        %v513 = vsub.s32 5, %v512
        %v514 = vrot.slane %v360, %v513
        %v515 = vlaneseq
        %v516 = vshrl.u32 %v515, 7
        %v517 = vsub.s32 1, %v516
        %v518 = vrot.slane %v361, %v517
        %v519 = vlaneseq
        %v520 = vshrl.u32 %v519, 7
        %v521 = vsub.s32 5, %v520
        %v522 = vrot.slane %v361, %v521
        %v523 = vlaneseq
        %v524 = vshrl.u32 %v523, 7
        %v525 = vsub.s32 1, %v524
        %v526 = vrot.slane %v362, %v525
        %v527 = vlaneseq
        %v528 = vshrl.u32 %v527, 7
        %v529 = vsub.s32 5, %v528
        %v530 = vrot.slane %v362, %v529
        %v531 = vlaneseq
        %v532 = vshrl.u32 %v531, 7
        %v533 = vsub.s32 1, %v532
        %v534 = vrot.slane %v363, %v533
        %v535 = vlaneseq
        %v536 = vshrl.u32 %v535, 7
        %v537 = vsub.s32 5, %v536
        %v538 = vrot.slane %v363, %v537
        %v547 = vlaneseq
        %v548 = vshrl.u32 %v547, 7
        %v549 = vsub.s32 1, %v548
        %v550 = vrot.slane %v510, %v549
        %v551 = vlaneseq
        %v552 = vshrl.u32 %v551, 7
        %v553 = vsub.s32 1, %v552
        %v554 = vrot.slane %v514, %v553
        %v555 = vlaneseq
        %v556 = vshrl.u32 %v555, 7
        %v557 = vsub.s32 1, %v556
        %v558 = vrot.slane %v518, %v557
        %v559 = vlaneseq
        %v560 = vshrl.u32 %v559, 7
        %v561 = vsub.s32 1, %v560
        %v562 = vrot.slane %v522, %v561
        %v563 = vlaneseq
        %v564 = vshrl.u32 %v563, 7
        %v565 = vsub.s32 1, %v564
        %v566 = vrot.slane %v526, %v565
        %v567 = vlaneseq
        %v568 = vshrl.u32 %v567, 7
        %v569 = vsub.s32 1, %v568
        %v570 = vrot.slane %v530, %v569
        %v571 = vlaneseq
        %v572 = vshrl.u32 %v571, 7
        %v573 = vsub.s32 1, %v572
        %v574 = vrot.slane %v534, %v573
        %v575 = vlaneseq
        %v576 = vshrl.u32 %v575, 7
        %v577 = vsub.s32 1, %v576
        %v578 = vrot.slane %v538, %v577
        %v579 = vmul.f32 %v505, %v550
        %v580 = vmul.f32 %v505, %v554
        %v581 = vmul.f32 %v505, %v558
        %v582 = vmul.f32 %v505, %v562
        %v583 = vmul.f32 %v505, %v566
        %v584 = vmul.f32 %v505, %v570
        %v585 = vmul.f32 %v505, %v574
        %v586 = vmul.f32 %v505, %v578
        %v587 = vadd.f32 %v495, %v579
        %v588 = vadd.f32 %v496, %v580
        %v589 = vadd.f32 %v497, %v581
        %v590 = vadd.f32 %v498, %v582
        %v591 = vadd.f32 %v499, %v583
        %v592 = vadd.f32 %v500, %v584
        %v593 = vadd.f32 %v501, %v585
        %v594 = vadd.f32 %v502, %v586
        %595 = vset.pattern.permute.xlu0 2
        %596 = vperm.xlu0 %595, %v359
        %v597 = vpop.permute.xlu0 %596
        %v599 = vlaneseq
        %v600 = vshrl.u32 %v599, 7
        %v601 = vsub.s32 2, %v600
        %v602 = vrot.slane %v360, %v601
        %v603 = vlaneseq
        %v604 = vshrl.u32 %v603, 7
        %v605 = vsub.s32 6, %v604
        %v606 = vrot.slane %v360, %v605
        %v607 = vlaneseq
        %v608 = vshrl.u32 %v607, 7
        %v609 = vsub.s32 2, %v608
        %v610 = vrot.slane %v361, %v609
        %v611 = vlaneseq
        %v612 = vshrl.u32 %v611, 7
        %v613 = vsub.s32 6, %v612
        %v614 = vrot.slane %v361, %v613
        %v615 = vlaneseq
        %v616 = vshrl.u32 %v615, 7
        %v617 = vsub.s32 2, %v616
        %v618 = vrot.slane %v362, %v617
        %v619 = vlaneseq
        %v620 = vshrl.u32 %v619, 7
        %v621 = vsub.s32 6, %v620
        %v622 = vrot.slane %v362, %v621
        %v623 = vlaneseq
        %v624 = vshrl.u32 %v623, 7
        %v625 = vsub.s32 2, %v624
        %v626 = vrot.slane %v363, %v625
        %v627 = vlaneseq
        %v628 = vshrl.u32 %v627, 7
        %v629 = vsub.s32 6, %v628
        %v630 = vrot.slane %v363, %v629
        %v639 = vlaneseq
        %v640 = vshrl.u32 %v639, 7
        %v641 = vsub.s32 2, %v640
        %v642 = vrot.slane %v602, %v641
        %v643 = vlaneseq
        %v644 = vshrl.u32 %v643, 7
        %v645 = vsub.s32 2, %v644
        %v646 = vrot.slane %v606, %v645
        %v647 = vlaneseq
        %v648 = vshrl.u32 %v647, 7
        %v649 = vsub.s32 2, %v648
        %v650 = vrot.slane %v610, %v649
        %v651 = vlaneseq
        %v652 = vshrl.u32 %v651, 7
        %v653 = vsub.s32 2, %v652
        %v654 = vrot.slane %v614, %v653
        %v655 = vlaneseq
        %v656 = vshrl.u32 %v655, 7
        %v657 = vsub.s32 2, %v656
        %v658 = vrot.slane %v618, %v657
        %v659 = vlaneseq
        %v660 = vshrl.u32 %v659, 7
        %v661 = vsub.s32 2, %v660
        %v662 = vrot.slane %v622, %v661
        %v663 = vlaneseq
        %v664 = vshrl.u32 %v663, 7
        %v665 = vsub.s32 2, %v664
        %v666 = vrot.slane %v626, %v665
        %v667 = vlaneseq
        %v668 = vshrl.u32 %v667, 7
        %v669 = vsub.s32 2, %v668
        %v670 = vrot.slane %v630, %v669
        %v671 = vmul.f32 %v597, %v642
        %v672 = vmul.f32 %v597, %v646
        %v673 = vmul.f32 %v597, %v650
        %v674 = vmul.f32 %v597, %v654
        %v675 = vmul.f32 %v597, %v658
        %v676 = vmul.f32 %v597, %v662
        %v677 = vmul.f32 %v597, %v666
        %v678 = vmul.f32 %v597, %v670
        %v679 = vadd.f32 %v587, %v671
        %v680 = vadd.f32 %v588, %v672
        %v681 = vadd.f32 %v589, %v673
        %v682 = vadd.f32 %v590, %v674
        %v683 = vadd.f32 %v591, %v675
        %v684 = vadd.f32 %v592, %v676
        %v685 = vadd.f32 %v593, %v677
        %v686 = vadd.f32 %v594, %v678
        %687 = vset.pattern.permute.xlu0 3
        %688 = vperm.xlu0 %687, %v359
        %v689 = vpop.permute.xlu0 %688
        %v691 = vlaneseq
        %v692 = vshrl.u32 %v691, 7
        %v693 = vsub.s32 3, %v692
        %v694 = vrot.slane %v360, %v693
        %v695 = vlaneseq
        %v696 = vshrl.u32 %v695, 7
        %v697 = vsub.s32 7, %v696
        %v698 = vrot.slane %v360, %v697
        %v699 = vlaneseq
        %v700 = vshrl.u32 %v699, 7
        %v701 = vsub.s32 3, %v700
        %v702 = vrot.slane %v361, %v701
        %v703 = vlaneseq
        %v704 = vshrl.u32 %v703, 7
        %v705 = vsub.s32 7, %v704
        %v706 = vrot.slane %v361, %v705
        %v707 = vlaneseq
        %v708 = vshrl.u32 %v707, 7
        %v709 = vsub.s32 3, %v708
        %v710 = vrot.slane %v362, %v709
        %v711 = vlaneseq
        %v712 = vshrl.u32 %v711, 7
        %v713 = vsub.s32 7, %v712
        %v714 = vrot.slane %v362, %v713
        %v715 = vlaneseq
        %v716 = vshrl.u32 %v715, 7
        %v717 = vsub.s32 3, %v716
        %v718 = vrot.slane %v363, %v717
        %v719 = vlaneseq
        %v720 = vshrl.u32 %v719, 7
        %v721 = vsub.s32 7, %v720
        %v722 = vrot.slane %v363, %v721
        %v731 = vlaneseq
        %v732 = vshrl.u32 %v731, 7
        %v733 = vsub.s32 3, %v732
        %v734 = vrot.slane %v694, %v733
        %v735 = vlaneseq
        %v736 = vshrl.u32 %v735, 7
        %v737 = vsub.s32 3, %v736
        %v738 = vrot.slane %v698, %v737
        %v739 = vlaneseq
        %v740 = vshrl.u32 %v739, 7
        %v741 = vsub.s32 3, %v740
        %v742 = vrot.slane %v702, %v741
        %v743 = vlaneseq
        %v744 = vshrl.u32 %v743, 7
        %v745 = vsub.s32 3, %v744
        %v746 = vrot.slane %v706, %v745
        %v747 = vlaneseq
        %v748 = vshrl.u32 %v747, 7
        %v749 = vsub.s32 3, %v748
        %v750 = vrot.slane %v710, %v749
        %v751 = vlaneseq
        %v752 = vshrl.u32 %v751, 7
        %v753 = vsub.s32 3, %v752
        %v754 = vrot.slane %v714, %v753
        %v755 = vlaneseq
        %v756 = vshrl.u32 %v755, 7
        %v757 = vsub.s32 3, %v756
        %v758 = vrot.slane %v718, %v757
        %v759 = vlaneseq
        %v760 = vshrl.u32 %v759, 7
        %v761 = vsub.s32 3, %v760
        %v762 = vrot.slane %v722, %v761
        %v763 = vmul.f32 %v689, %v734
        %v764 = vmul.f32 %v689, %v738
        %v765 = vmul.f32 %v689, %v742
        %v766 = vmul.f32 %v689, %v746
        %v767 = vmul.f32 %v689, %v750
        %v768 = vmul.f32 %v689, %v754
        %v769 = vmul.f32 %v689, %v758
        %v770 = vmul.f32 %v689, %v762
        %v771 = vadd.f32 %v679, %v763
        %v772 = vadd.f32 %v680, %v764
        %v773 = vadd.f32 %v681, %v765
        %v774 = vadd.f32 %v682, %v766
        %v775 = vadd.f32 %v683, %v767
        %v776 = vadd.f32 %v684, %v768
        %v777 = vadd.f32 %v685, %v769
        %v778 = vadd.f32 %v686, %v770
        %v779 = vmax.f32 %v771, 0.0
        %v780 = vmax.f32 %v772, 0.0
        %v781 = vmax.f32 %v773, 0.0
        %v782 = vmax.f32 %v774, 0.0
        %v783 = vmax.f32 %v775, 0.0
        %v784 = vmax.f32 %v776, 0.0
        %v785 = vmax.f32 %v777, 0.0
        %v786 = vmax.f32 %v778, 0.0
        %v787 = vld [vmem:[#allocation2] sm:$0xff]
        %v788 = vld [vmem:[%s307] sm:$0xff]
        %v789 = vld [vmem:[%s307 + $0x8] sm:$0xff]
        %v790 = vld [vmem:[%s307 + $0x10] sm:$0xff]
        %v791 = vld [vmem:[%s307 + $0x18] sm:$0xff]
        %v792 = vld [vmem:[%s307 + $0x20] sm:$0xff]
        %v793 = vld [vmem:[%s307 + $0x28] sm:$0xff]
        %v794 = vld [vmem:[%s307 + $0x30] sm:$0xff]
        %v795 = vld [vmem:[%s307 + $0x38] sm:$0xff]
        %v796 = vld [vmem:[%s307 + $0x40] sm:$0xff]
        %v797 = vld [vmem:[%s307 + $0x48] sm:$0xff]
        %v798 = vld [vmem:[%s307 + $0x50] sm:$0xff]
        %v799 = vld [vmem:[%s307 + $0x58] sm:$0xff]
        %v800 = vld [vmem:[%s307 + $0x60] sm:$0xff]
        %v801 = vld [vmem:[%s307 + $0x68] sm:$0xff]
        %v802 = vld [vmem:[%s307 + $0x70] sm:$0xff]
        %v803 = vld [vmem:[%s307 + $0x78] sm:$0xff]
        %v804 = vld [vmem:[%s307 + $0x80] sm:$0xff]
        %v805 = vld [vmem:[%s307 + $0x88] sm:$0xff]
        %v806 = vld [vmem:[%s307 + $0x90] sm:$0xff]
        %v807 = vld [vmem:[%s307 + $0x98] sm:$0xff]
        %v808 = vld [vmem:[%s307 + $0xa0] sm:$0xff]
        %v809 = vld [vmem:[%s307 + $0xa8] sm:$0xff]
        %v810 = vld [vmem:[%s307 + $0xb0] sm:$0xff]
        %v811 = vld [vmem:[%s307 + $0xb8] sm:$0xff]
        %v812 = vld [vmem:[%s307 + $0xc0] sm:$0xff]
        %v813 = vld [vmem:[%s307 + $0xc8] sm:$0xff]
        %v814 = vld [vmem:[%s307 + $0xd0] sm:$0xff]
        %v815 = vld [vmem:[%s307 + $0xd8] sm:$0xff]
        %v816 = vld [vmem:[%s307 + $0xe0] sm:$0xff]
        %v817 = vld [vmem:[%s307 + $0xe8] sm:$0xff]
        %v818 = vld [vmem:[%s307 + $0xf0] sm:$0xff]
        %v819 = vld [vmem:[%s307 + $0xf8] sm:$0xff]
        %v820 = vld [vmem:[%s307 + $0x100] sm:$0xff]
        %v821 = vld [vmem:[%s307 + $0x108] sm:$0xff]
        %v822 = vld [vmem:[%s307 + $0x110] sm:$0xff]
        %v823 = vld [vmem:[%s307 + $0x118] sm:$0xff]
        %v824 = vld [vmem:[%s307 + $0x120] sm:$0xff]
        %v825 = vld [vmem:[%s307 + $0x128] sm:$0xff]
        %v826 = vld [vmem:[%s307 + $0x130] sm:$0xff]
        %v827 = vld [vmem:[%s307 + $0x138] sm:$0xff]
        %v828 = vld [vmem:[%s307 + $0x140] sm:$0xff]
        %v829 = vld [vmem:[%s307 + $0x148] sm:$0xff]
        %v830 = vld [vmem:[%s307 + $0x150] sm:$0xff]
        %v831 = vld [vmem:[%s307 + $0x158] sm:$0xff]
        %v832 = vld [vmem:[%s307 + $0x160] sm:$0xff]
        %v833 = vld [vmem:[%s307 + $0x168] sm:$0xff]
        %v834 = vld [vmem:[%s307 + $0x170] sm:$0xff]
        %v835 = vld [vmem:[%s307 + $0x178] sm:$0xff]
        %v836 = vld [vmem:[%s307 + $0x180] sm:$0xff]
        %v837 = vld [vmem:[%s307 + $0x188] sm:$0xff]
        %v838 = vld [vmem:[%s307 + $0x190] sm:$0xff]
        %v839 = vld [vmem:[%s307 + $0x198] sm:$0xff]
        %v840 = vld [vmem:[%s307 + $0x1a0] sm:$0xff]
        %v841 = vld [vmem:[%s307 + $0x1a8] sm:$0xff]
        %v842 = vld [vmem:[%s307 + $0x1b0] sm:$0xff]
        %v843 = vld [vmem:[%s307 + $0x1b8] sm:$0xff]
        %v844 = vld [vmem:[%s307 + $0x1c0] sm:$0xff]
        %v845 = vld [vmem:[%s307 + $0x1c8] sm:$0xff]
        %v846 = vld [vmem:[%s307 + $0x1d0] sm:$0xff]
        %v847 = vld [vmem:[%s307 + $0x1d8] sm:$0xff]
        %v848 = vld [vmem:[%s307 + $0x1e0] sm:$0xff]
        %v849 = vld [vmem:[%s307 + $0x1e8] sm:$0xff]
        %v850 = vld [vmem:[%s307 + $0x1f0] sm:$0xff]
        %v851 = vld [vmem:[%s307 + $0x1f8] sm:$0xff]
        %v852 = vld [vmem:[%s307 + $0x200] sm:$0xff]
        %v853 = vld [vmem:[%s307 + $0x208] sm:$0xff]
        %v854 = vld [vmem:[%s307 + $0x210] sm:$0xff]
        %v855 = vld [vmem:[%s307 + $0x218] sm:$0xff]
        %v856 = vld [vmem:[%s307 + $0x220] sm:$0xff]
        %v857 = vld [vmem:[%s307 + $0x228] sm:$0xff]
        %v858 = vld [vmem:[%s307 + $0x230] sm:$0xff]
        %v859 = vld [vmem:[%s307 + $0x238] sm:$0xff]
        %v860 = vld [vmem:[%s307 + $0x240] sm:$0xff]
        %v861 = vld [vmem:[%s307 + $0x248] sm:$0xff]
        %v862 = vld [vmem:[%s307 + $0x250] sm:$0xff]
        %v863 = vld [vmem:[%s307 + $0x258] sm:$0xff]
        %v864 = vld [vmem:[%s307 + $0x260] sm:$0xff]
        %v865 = vld [vmem:[%s307 + $0x268] sm:$0xff]
        %v866 = vld [vmem:[%s307 + $0x270] sm:$0xff]
        %v867 = vld [vmem:[%s307 + $0x278] sm:$0xff]
        %v868 = vld [vmem:[%s307 + $0x280] sm:$0xff]
        %v869 = vld [vmem:[%s307 + $0x288] sm:$0xff]
        %v870 = vld [vmem:[%s307 + $0x290] sm:$0xff]
        %v871 = vld [vmem:[%s307 + $0x298] sm:$0xff]
        %v872 = vld [vmem:[%s307 + $0x2a0] sm:$0xff]
        %v873 = vld [vmem:[%s307 + $0x2a8] sm:$0xff]
        %v874 = vld [vmem:[%s307 + $0x2b0] sm:$0xff]
        %v875 = vld [vmem:[%s307 + $0x2b8] sm:$0xff]
        %v876 = vld [vmem:[%s307 + $0x2c0] sm:$0xff]
        %v877 = vld [vmem:[%s307 + $0x2c8] sm:$0xff]
        %v878 = vld [vmem:[%s307 + $0x2d0] sm:$0xff]
        %v879 = vld [vmem:[%s307 + $0x2d8] sm:$0xff]
        %v880 = vld [vmem:[%s307 + $0x2e0] sm:$0xff]
        %v881 = vld [vmem:[%s307 + $0x2e8] sm:$0xff]
        %v882 = vld [vmem:[%s307 + $0x2f0] sm:$0xff]
        %v883 = vld [vmem:[%s307 + $0x2f8] sm:$0xff]
        %v884 = vld [vmem:[%s307 + $0x300] sm:$0xff]
        %v885 = vld [vmem:[%s307 + $0x308] sm:$0xff]
        %v886 = vld [vmem:[%s307 + $0x310] sm:$0xff]
        %v887 = vld [vmem:[%s307 + $0x318] sm:$0xff]
        %v888 = vld [vmem:[%s307 + $0x320] sm:$0xff]
        %v889 = vld [vmem:[%s307 + $0x328] sm:$0xff]
        %v890 = vld [vmem:[%s307 + $0x330] sm:$0xff]
        %v891 = vld [vmem:[%s307 + $0x338] sm:$0xff]
        %v892 = vld [vmem:[%s307 + $0x340] sm:$0xff]
        %v893 = vld [vmem:[%s307 + $0x348] sm:$0xff]
        %v894 = vld [vmem:[%s307 + $0x350] sm:$0xff]
        %v895 = vld [vmem:[%s307 + $0x358] sm:$0xff]
        %v896 = vld [vmem:[%s307 + $0x360] sm:$0xff]
        %v897 = vld [vmem:[%s307 + $0x368] sm:$0xff]
        %v898 = vld [vmem:[%s307 + $0x370] sm:$0xff]
        %v899 = vld [vmem:[%s307 + $0x378] sm:$0xff]
        %v900 = vld [vmem:[%s307 + $0x380] sm:$0xff]
        %v901 = vld [vmem:[%s307 + $0x388] sm:$0xff]
        %v902 = vld [vmem:[%s307 + $0x390] sm:$0xff]
        %v903 = vld [vmem:[%s307 + $0x398] sm:$0xff]
        %v904 = vld [vmem:[%s307 + $0x3a0] sm:$0xff]
        %v905 = vld [vmem:[%s307 + $0x3a8] sm:$0xff]
        %v906 = vld [vmem:[%s307 + $0x3b0] sm:$0xff]
        %v907 = vld [vmem:[%s307 + $0x3b8] sm:$0xff]
        %v908 = vld [vmem:[%s307 + $0x3c0] sm:$0xff]
        %v909 = vld [vmem:[%s307 + $0x3c8] sm:$0xff]
        %v910 = vld [vmem:[%s307 + $0x3d0] sm:$0xff]
        %v911 = vld [vmem:[%s307 + $0x3d8] sm:$0xff]
        %v912 = vld [vmem:[%s307 + $0x3e0] sm:$0xff]
        %v913 = vld [vmem:[%s307 + $0x3e8] sm:$0xff]
        %v914 = vld [vmem:[%s307 + $0x3f0] sm:$0xff]
        %v915 = vld [vmem:[%s307 + $0x3f8] sm:$0xff]
        %916 = vmatprep.subr.mxu0 0.0
        %917 = vmatpush1.msra.mxu0 %v803
        %918 = vmatprep.subr.mxu0 0.0
        %919 = vmatpush1.msra.mxu0 %v802
        %920 = vmatprep.subr.mxu0 0.0
        %921 = vmatpush1.msra.mxu0 %v801
        %922 = vmatprep.subr.mxu0 0.0
        %923 = vmatpush1.msra.mxu0 %v800
        %924 = vmatprep.subr.mxu0 0.0
        %925 = vmatpush1.msra.mxu0 %v799
        %926 = vmatprep.subr.mxu0 0.0
        %927 = vmatpush1.msra.mxu0 %v798
        %928 = vmatprep.subr.mxu0 0.0
        %929 = vmatpush1.msra.mxu0 %v797
        %930 = vmatprep.subr.mxu0 0.0
        %931 = vmatpush1.msra.mxu0 %v796
        %932 = vmatprep.subr.mxu0 0.0
        %933 = vmatpush1.msra.mxu0 %v795
        %934 = vmatprep.subr.mxu0 0.0
        %935 = vmatpush1.msra.mxu0 %v794
        %936 = vmatprep.subr.mxu0 0.0
        %937 = vmatpush1.msra.mxu0 %v793
        %938 = vmatprep.subr.mxu0 0.0
        %939 = vmatpush1.msra.mxu0 %v792
        %940 = vmatprep.subr.mxu0 0.0
        %941 = vmatpush1.msra.mxu0 %v791
        %942 = vmatprep.subr.mxu0 0.0
        %943 = vmatpush1.msra.mxu0 %v790
        %944 = vmatprep.subr.mxu0 0.0
        %945 = vmatpush1.msra.mxu0 %v789
        %946 = vmatprep.subr.mxu0 0.0
        %947 = vmatpush1.msra.mxu0 %v788
        %948 = vmatprep.subr.mxu0 0.0
        %949 = vmatpush2.msra.mxu0 %v819
        %950 = vmatprep.subr.mxu0 0.0
        %951 = vmatpush2.msra.mxu0 %v818
        %952 = vmatprep.subr.mxu0 0.0
        %953 = vmatpush2.msra.mxu0 %v817
        %954 = vmatprep.subr.mxu0 0.0
        %955 = vmatpush2.msra.mxu0 %v816
        %956 = vmatprep.subr.mxu0 0.0
        %957 = vmatpush2.msra.mxu0 %v815
        %958 = vmatprep.subr.mxu0 0.0
        %959 = vmatpush2.msra.mxu0 %v814
        %960 = vmatprep.subr.mxu0 0.0
        %961 = vmatpush2.msra.mxu0 %v813
        %962 = vmatprep.subr.mxu0 0.0
        %963 = vmatpush2.msra.mxu0 %v812
        %964 = vmatprep.subr.mxu0 0.0
        %965 = vmatpush2.msra.mxu0 %v811
        %966 = vmatprep.subr.mxu0 0.0
        %967 = vmatpush2.msra.mxu0 %v810
        %968 = vmatprep.subr.mxu0 0.0
        %969 = vmatpush2.msra.mxu0 %v809
        %970 = vmatprep.subr.mxu0 0.0
        %971 = vmatpush2.msra.mxu0 %v808
        %972 = vmatprep.subr.mxu0 0.0
        %973 = vmatpush2.msra.mxu0 %v807
        %974 = vmatprep.subr.mxu0 0.0
        %975 = vmatpush2.msra.mxu0 %v806
        %976 = vmatprep.subr.mxu0 0.0
        %977 = vmatpush2.msra.mxu0 %v805
        %978 = vmatprep.subr.mxu0 0.0
        %979 = vmatpush2.msra.mxu0 %v804
        %980 = vmatprep.mubr.f32.mxu0 %v780
        %981 = vmatmul.mubr.f32.gmra.mxu0 %v779
        %v982 = vpop.f32.mrf.mxu0
        %v983 = vadd.f32 0.0, %v982
        %v984 = vpop.f32.mrf.mxu0
        %985 = vdwg.mxu0
        %986 = vmatprep.subr.mxu0 0.0
        %987 = vmatpush1.msra.mxu0 %v835
        %988 = vmatprep.subr.mxu0 0.0
        %989 = vmatpush1.msra.mxu0 %v834
        %990 = vmatprep.subr.mxu0 0.0
        %991 = vmatpush1.msra.mxu0 %v833
        %992 = vmatprep.subr.mxu0 0.0
        %993 = vmatpush1.msra.mxu0 %v832
        %994 = vmatprep.subr.mxu0 0.0
        %995 = vmatpush1.msra.mxu0 %v831
        %996 = vmatprep.subr.mxu0 0.0
        %997 = vmatpush1.msra.mxu0 %v830
        %998 = vmatprep.subr.mxu0 0.0
        %999 = vmatpush1.msra.mxu0 %v829
        %1000 = vmatprep.subr.mxu0 0.0
        %1001 = vmatpush1.msra.mxu0 %v828
        %1002 = vmatprep.subr.mxu0 0.0
        %1003 = vmatpush1.msra.mxu0 %v827
        %1004 = vmatprep.subr.mxu0 0.0
        %1005 = vmatpush1.msra.mxu0 %v826
        %1006 = vmatprep.subr.mxu0 0.0
        %1007 = vmatpush1.msra.mxu0 %v825
        %1008 = vmatprep.subr.mxu0 0.0
        %1009 = vmatpush1.msra.mxu0 %v824
        %1010 = vmatprep.subr.mxu0 0.0
        %1011 = vmatpush1.msra.mxu0 %v823
        %1012 = vmatprep.subr.mxu0 0.0
        %1013 = vmatpush1.msra.mxu0 %v822
        %1014 = vmatprep.subr.mxu0 0.0
        %1015 = vmatpush1.msra.mxu0 %v821
        %1016 = vmatprep.subr.mxu0 0.0
        %1017 = vmatpush1.msra.mxu0 %v820
        %1018 = vmatprep.subr.mxu0 0.0
        %1019 = vmatpush2.msra.mxu0 %v851
        %1020 = vmatprep.subr.mxu0 0.0
        %1021 = vmatpush2.msra.mxu0 %v850
        %1022 = vmatprep.subr.mxu0 0.0
        %1023 = vmatpush2.msra.mxu0 %v849
        %1024 = vmatprep.subr.mxu0 0.0
        %1025 = vmatpush2.msra.mxu0 %v848
        %1026 = vmatprep.subr.mxu0 0.0
        %1027 = vmatpush2.msra.mxu0 %v847
        %1028 = vmatprep.subr.mxu0 0.0
        %1029 = vmatpush2.msra.mxu0 %v846
        %1030 = vmatprep.subr.mxu0 0.0
        %1031 = vmatpush2.msra.mxu0 %v845
        %1032 = vmatprep.subr.mxu0 0.0
        %1033 = vmatpush2.msra.mxu0 %v844
        %1034 = vmatprep.subr.mxu0 0.0
        %1035 = vmatpush2.msra.mxu0 %v843
        %1036 = vmatprep.subr.mxu0 0.0
        %1037 = vmatpush2.msra.mxu0 %v842
        %1038 = vmatprep.subr.mxu0 0.0
        %1039 = vmatpush2.msra.mxu0 %v841
        %1040 = vmatprep.subr.mxu0 0.0
        %1041 = vmatpush2.msra.mxu0 %v840
        %1042 = vmatprep.subr.mxu0 0.0
        %1043 = vmatpush2.msra.mxu0 %v839
        %1044 = vmatprep.subr.mxu0 0.0
        %1045 = vmatpush2.msra.mxu0 %v838
        %1046 = vmatprep.subr.mxu0 0.0
        %1047 = vmatpush2.msra.mxu0 %v837
        %1048 = vmatprep.subr.mxu0 0.0
        %1049 = vmatpush2.msra.mxu0 %v836
        %1050 = vmatprep.mubr.f32.mxu0 %v782
        %1051 = vmatmul.mubr.f32.gmra.mxu0 %v781
        %v1052 = vpop.f32.mrf.mxu0
        %v1053 = vadd.f32 %v983, %v1052
        %v1054 = vpop.f32.mrf.mxu0
        %1055 = vdwg.mxu0
        %1056 = vmatprep.subr.mxu0 0.0
        %1057 = vmatpush1.msra.mxu0 %v867
        %1058 = vmatprep.subr.mxu0 0.0
        %1059 = vmatpush1.msra.mxu0 %v866
        %1060 = vmatprep.subr.mxu0 0.0
        %1061 = vmatpush1.msra.mxu0 %v865
        %1062 = vmatprep.subr.mxu0 0.0
        %1063 = vmatpush1.msra.mxu0 %v864
        %1064 = vmatprep.subr.mxu0 0.0
        %1065 = vmatpush1.msra.mxu0 %v863
        %1066 = vmatprep.subr.mxu0 0.0
        %1067 = vmatpush1.msra.mxu0 %v862
        %1068 = vmatprep.subr.mxu0 0.0
        %1069 = vmatpush1.msra.mxu0 %v861
        %1070 = vmatprep.subr.mxu0 0.0
        %1071 = vmatpush1.msra.mxu0 %v860
        %1072 = vmatprep.subr.mxu0 0.0
        %1073 = vmatpush1.msra.mxu0 %v859
        %1074 = vmatprep.subr.mxu0 0.0
        %1075 = vmatpush1.msra.mxu0 %v858
        %1076 = vmatprep.subr.mxu0 0.0
        %1077 = vmatpush1.msra.mxu0 %v857
        %1078 = vmatprep.subr.mxu0 0.0
        %1079 = vmatpush1.msra.mxu0 %v856
        %1080 = vmatprep.subr.mxu0 0.0
        %1081 = vmatpush1.msra.mxu0 %v855
        %1082 = vmatprep.subr.mxu0 0.0
        %1083 = vmatpush1.msra.mxu0 %v854
        %1084 = vmatprep.subr.mxu0 0.0
        %1085 = vmatpush1.msra.mxu0 %v853
        %1086 = vmatprep.subr.mxu0 0.0
        %1087 = vmatpush1.msra.mxu0 %v852
        %1088 = vmatprep.subr.mxu0 0.0
        %1089 = vmatpush2.msra.mxu0 %v883
        %1090 = vmatprep.subr.mxu0 0.0
        %1091 = vmatpush2.msra.mxu0 %v882
        %1092 = vmatprep.subr.mxu0 0.0
        %1093 = vmatpush2.msra.mxu0 %v881
        %1094 = vmatprep.subr.mxu0 0.0
        %1095 = vmatpush2.msra.mxu0 %v880
        %1096 = vmatprep.subr.mxu0 0.0
        %1097 = vmatpush2.msra.mxu0 %v879
        %1098 = vmatprep.subr.mxu0 0.0
        %1099 = vmatpush2.msra.mxu0 %v878
        %1100 = vmatprep.subr.mxu0 0.0
        %1101 = vmatpush2.msra.mxu0 %v877
        %1102 = vmatprep.subr.mxu0 0.0
        %1103 = vmatpush2.msra.mxu0 %v876
        %1104 = vmatprep.subr.mxu0 0.0
        %1105 = vmatpush2.msra.mxu0 %v875
        %1106 = vmatprep.subr.mxu0 0.0
        %1107 = vmatpush2.msra.mxu0 %v874
        %1108 = vmatprep.subr.mxu0 0.0
        %1109 = vmatpush2.msra.mxu0 %v873
        %1110 = vmatprep.subr.mxu0 0.0
        %1111 = vmatpush2.msra.mxu0 %v872
        %1112 = vmatprep.subr.mxu0 0.0
        %1113 = vmatpush2.msra.mxu0 %v871
        %1114 = vmatprep.subr.mxu0 0.0
        %1115 = vmatpush2.msra.mxu0 %v870
        %1116 = vmatprep.subr.mxu0 0.0
        %1117 = vmatpush2.msra.mxu0 %v869
        %1118 = vmatprep.subr.mxu0 0.0
        %1119 = vmatpush2.msra.mxu0 %v868
        %1120 = vmatprep.mubr.f32.mxu0 %v784
        %1121 = vmatmul.mubr.f32.gmra.mxu0 %v783
        %v1122 = vpop.f32.mrf.mxu0
        %v1123 = vadd.f32 %v1053, %v1122
        %v1124 = vpop.f32.mrf.mxu0
        %1125 = vdwg.mxu0
        %1126 = vmatprep.subr.mxu0 0.0
        %1127 = vmatpush1.msra.mxu0 %v899
        %1128 = vmatprep.subr.mxu0 0.0
        %1129 = vmatpush1.msra.mxu0 %v898
        %1130 = vmatprep.subr.mxu0 0.0
        %1131 = vmatpush1.msra.mxu0 %v897
        %1132 = vmatprep.subr.mxu0 0.0
        %1133 = vmatpush1.msra.mxu0 %v896
        %1134 = vmatprep.subr.mxu0 0.0
        %1135 = vmatpush1.msra.mxu0 %v895
        %1136 = vmatprep.subr.mxu0 0.0
        %1137 = vmatpush1.msra.mxu0 %v894
        %1138 = vmatprep.subr.mxu0 0.0
        %1139 = vmatpush1.msra.mxu0 %v893
        %1140 = vmatprep.subr.mxu0 0.0
        %1141 = vmatpush1.msra.mxu0 %v892
        %1142 = vmatprep.subr.mxu0 0.0
        %1143 = vmatpush1.msra.mxu0 %v891
        %1144 = vmatprep.subr.mxu0 0.0
        %1145 = vmatpush1.msra.mxu0 %v890
        %1146 = vmatprep.subr.mxu0 0.0
        %1147 = vmatpush1.msra.mxu0 %v889
        %1148 = vmatprep.subr.mxu0 0.0
        %1149 = vmatpush1.msra.mxu0 %v888
        %1150 = vmatprep.subr.mxu0 0.0
        %1151 = vmatpush1.msra.mxu0 %v887
        %1152 = vmatprep.subr.mxu0 0.0
        %1153 = vmatpush1.msra.mxu0 %v886
        %1154 = vmatprep.subr.mxu0 0.0
        %1155 = vmatpush1.msra.mxu0 %v885
        %1156 = vmatprep.subr.mxu0 0.0
        %1157 = vmatpush1.msra.mxu0 %v884
        %1158 = vmatprep.subr.mxu0 0.0
        %1159 = vmatpush2.msra.mxu0 %v915
        %1160 = vmatprep.subr.mxu0 0.0
        %1161 = vmatpush2.msra.mxu0 %v914
        %1162 = vmatprep.subr.mxu0 0.0
        %1163 = vmatpush2.msra.mxu0 %v913
        %1164 = vmatprep.subr.mxu0 0.0
        %1165 = vmatpush2.msra.mxu0 %v912
        %1166 = vmatprep.subr.mxu0 0.0
        %1167 = vmatpush2.msra.mxu0 %v911
        %1168 = vmatprep.subr.mxu0 0.0
        %1169 = vmatpush2.msra.mxu0 %v910
        %1170 = vmatprep.subr.mxu0 0.0
        %1171 = vmatpush2.msra.mxu0 %v909
        %1172 = vmatprep.subr.mxu0 0.0
        %1173 = vmatpush2.msra.mxu0 %v908
        %1174 = vmatprep.subr.mxu0 0.0
        %1175 = vmatpush2.msra.mxu0 %v907
        %1176 = vmatprep.subr.mxu0 0.0
        %1177 = vmatpush2.msra.mxu0 %v906
        %1178 = vmatprep.subr.mxu0 0.0
        %1179 = vmatpush2.msra.mxu0 %v905
        %1180 = vmatprep.subr.mxu0 0.0
        %1181 = vmatpush2.msra.mxu0 %v904
        %1182 = vmatprep.subr.mxu0 0.0
        %1183 = vmatpush2.msra.mxu0 %v903
        %1184 = vmatprep.subr.mxu0 0.0
        %1185 = vmatpush2.msra.mxu0 %v902
        %1186 = vmatprep.subr.mxu0 0.0
        %1187 = vmatpush2.msra.mxu0 %v901
        %1188 = vmatprep.subr.mxu0 0.0
        %1189 = vmatpush2.msra.mxu0 %v900
        %1190 = vmatprep.mubr.f32.mxu0 %v786
        %1191 = vmatmul.mubr.f32.gmra.mxu0 %v785
        %v1192 = vpop.f32.mrf.mxu0
        %v1193 = vadd.f32 %v1123, %v1192
        %v1194 = vpop.f32.mrf.mxu0
        %1195 = vdwg.mxu0
        %v1196 = vadd.f32 %v787, %v1193
        %1197 = vst [vmem:[#allocation2] sm:$0xff] %v1196
        %p1198 = scmp.eq.s32.totalorder %s29, 4
        // Predicated region
        $region61: #{tpu_custom_call.1} parent=39 // pred_check
          %p1199 = pneg %p1198
        $region62: #{tpu_custom_call.1} parent=39 // pred_check_branch
          %1201 = sbr.rel (%p1199) target = $region64
        $region63: #{tpu_custom_call.1} parent=39 // pred_region
          %v1202 = vld [vmem:[#allocation2] sm:$0xff]
          %v1203 = vld [vmem:[#allocation9] sm:$0x1]
          %v1205 = vlaneseq
          %v1206 = vshrl.u32 %v1205, 7
          %v1207 = vsub.s32 0, %v1206
          %v1208 = vrot.slane %v1203, %v1207
          %v1210 = vadd.f32 %v1202, %v1208
          %v1211 = vlaneseq
          %v1212 = vand.u32 %v1211, 127
          %vm1213 = vcmp.lt.s32.totalorder %v1212, 2
          %v1214 = vsel %vm1213, %v1210, -inf
          %1215 = vmax.xlane.f32.xlu0 %v1214
          %v1216 = vpop.xlane.xlu0 %1215
          %v1217 = vsub.f32 %v1214, %v1216
          %v1218 = vmul.f32 %v1217, 1.442695
          %v1219 = vpow.pop %v1218
          %1220 = vadd.xlane.f32.xlu0 %v1219
          %v1221 = vpop.xlane.xlu0 %1220
          %v1222 = vrcp.pop %v1221
          %v1223 = vmul.f32 %v1219, %v1222
          %v1224 = vsel %vm1213, %v1223, %v1210
          %1225 = vst [vmem:[#allocation11] sm:$0xff] %v1224
        $region64: #{tpu_custom_call.1} parent=39 // pred_fallthru
          _
        // Predicated region
        $region65: #{tpu_custom_call.1} parent=39 // pred_check
          %p1226 = pneg %p179
        $region66: #{tpu_custom_call.1} parent=39 // pred_check_branch
          %1228 = sbr.rel (%p1226) target = $region68
        $region67: #{tpu_custom_call.1} parent=39 // pred_region
          %s1230 = ssub.s32 128, 128
          %1231 = vsyncadd [#allocation5], %s1230
          %s1232 = smul.addr %s28, 128
          %s1233 = scalar_lea.hbm %s5, %s1232
          %s1235 = sshll.u32 [#allocation11], 4
          %s1236 = int_to_ptr.vmem [resolvable:$true] %s1235
          %1238 = dma.vmem_to_hbm [thread:$0]  %s1236, 128, %s1233, [#allocation5]
        $region68: #{tpu_custom_call.1} parent=39 // pred_fallthru
          _
        // Predicated region
        $region69: #{tpu_custom_call.1} parent=39 // pred_check
          %p1239 = pneg %p179
        $region70: #{tpu_custom_call.1} parent=39 // pred_check_branch
          %1241 = sbr.rel (%p1239) target = $region72
        $region71: #{tpu_custom_call.1} parent=39 // pred_region
          %1242 = dma.done [#allocation5], 128
        $region72: #{tpu_custom_call.1} parent=39 // pred_fallthru
          _
      $region40: #{tpu_custom_call.1} parent=5 // pred_fallthru
        _
      %p1243 = scmp.le.s32.totalorder 2, %s19
      // Predicated region
      $region73: #{tpu_custom_call.1} parent=5 // pred_check
        %p1244 = pneg %p1243
      $region74: #{tpu_custom_call.1} parent=5 // pred_check_branch
        %1246 = sbr.rel (%p1244) target = $region76
      $region75: #{tpu_custom_call.1} parent=5 // pred_region
        %s1247 = ssub.s32 %s19, 2
      $region76: #{tpu_custom_call.1} parent=5 // pred_fallthru
        _
    $region6: #{tpu_custom_call.1} parent=1 // loop_footer
      %s23 = sadd.s32 1, %s19
    $region7: #{tpu_custom_call.1} parent=1 // loop_footer_branch
      %18 = sbr.rel target = $region3
    $region8: #{tpu_custom_call.1} parent=1 // loop_exit
      _
    %1248 = vsyncpa [#allocation4], 1
    %s1249 = scalar_lea.sflag [#allocation4], 1
    %1250 = vsyncpa %s1249, 1
    %1251 = vsyncpa [#allocation7], 1
    %s1252 = scalar_lea.sflag [#allocation7], 1
    %1253 = vsyncpa %s1252, 1
    %1254 = vsyncpa [#allocation10], 1
    %1255 = vsyncpa [#allocation5], 1
    %s1256 = scalar_lea.sflag [#allocation5], 1
    %1257 = vsyncpa %s1256, 1

</llo_original>
